<compile_context>
chip_gen: v7x
topology: tpu7x:2x2x1
jax: 0.10.0
libtpu: 0.0.40
codegen_flags: <defaults>
</compile_context>

<pallas_src>
import functools

import jax
import jax.numpy as jnp
from jax.experimental import pallas as pl
from jax.experimental.pallas import tpu as pltpu


# ---------------------------------------------------------------------------
# small helpers
# ---------------------------------------------------------------------------
def _pow_sum(w, exponent):
    """sum(|w|^exponent); integer exponents use repeated VPU multiplies."""
    e_int = int(exponent)
    if float(exponent) == float(e_int) and e_int >= 1:
        base = w if (e_int % 2 == 0) else jnp.abs(w)   # even powers need no abs
        p = base
        for _ in range(e_int - 1):
            p = p * base
        return jnp.sum(p)
    # non-integer exponent: pow -> exp/log on the single EUP slot (rare path)
    return jnp.sum(jnp.abs(w) ** exponent)


def _block_diagonal(w):
    """(E, din, dout) -> block-diagonal (E*din, E*dout). Done once at init."""
    e, din, dout = w.shape
    out = jnp.zeros((e * din, e * dout), w.dtype)
    for i in range(e):
        out = out.at[i * din:(i + 1) * din, i * dout:(i + 1) * dout].set(w[i])
    return out


def _concat_columns(w):
    """(E, din, dout) -> (din, E*dout)  (shared-input first layer)."""
    e, din, dout = w.shape
    return jnp.transpose(w, (1, 0, 2)).reshape(din, e * dout)


def _pack_bias(b):
    """(E, 1, dout) -> (1, E*dout)."""
    e, _, dout = b.shape
    return jnp.transpose(b, (1, 0, 2)).reshape(1, e * dout)


# ---------------------------------------------------------------------------
# Kernel 1: fused ensemble MLP forward (all layers, lane-packed ensemble)
#           + optional fused weight-decay loss (exponent given statically)
# ---------------------------------------------------------------------------
def _fused_mlp_kernel(*refs, n_layers, fuse_decay, decays, decay_exponent):
    x_ref = refs[0]
    wb_refs = refs[1:1 + 2 * n_layers]            # [w0, b0, w1, b1, ...]
    if fuse_decay:
        o_ref, decay_ref = refs[-2], refs[-1]
    else:
        o_ref = refs[-1]

    h = x_ref[...]
    for li in range(n_layers):
        w = wb_refs[2 * li][...]
        b = wb_refs[2 * li + 1][...].astype(jnp.float32)
        # MXU input in the stored param dtype (bf16 on v6e/v7x), f32 accumulate.
        h = jnp.dot(h.astype(w.dtype), w,
                    preferred_element_type=jnp.float32) + b
        if li < n_layers - 1:
            # swish / SiLU on hidden layers; keep VPU/EUP math in f32
            # (v5e has no bf16 VPU/EUP path).
            h = h * jax.nn.sigmoid(h)
    o_ref[...] = h.astype(o_ref.dtype)            # lane-dense (B, E*Fout) slab

    if fuse_decay:
        # Weights are already resident in VMEM: the decay loss is free here.
        # Off-diagonal zeros of the packed weights contribute exactly 0.
        total = jnp.zeros((1, 1), jnp.float32)
        for li in range(n_layers):
            w = wb_refs[2 * li][...].astype(jnp.float32)
            total = total + (0.5 * decays[li]) * _pow_sum(w, decay_exponent)
        decay_ref[...] = total


def ensemble_mlp_forward(x_slab, packed_weights, packed_biases, *,
                         out_dtype=None, batch_block=None,
                         fuse_decay=False, decays=None, decay_exponent=2.0):
    """Fused forward for a lane-packed ensemble MLP in ONE pallas_call.

    x_slab         : (B, Fin) shared input, or (B, E*Fin) per-member slab.
    packed_weights : list of packed weights; layer 0 is (Fin, E*h0) (shared)
                     or (E*Fin, E*h0) (per-member); other layers (E*d, E*d').
    packed_biases  : list of (1, E*d') biases.
    Returns (y_slab (B, E*Fout), decay (1,1) or None).
    """
    bsz, fin = x_slab.shape
    n_layers = len(packed_weights)
    e_fout = packed_weights[-1].shape[-1]
    out_dtype = out_dtype if out_dtype is not None else x_slab.dtype

    if batch_block is None:
        # 512-row tiles sit near the HBM roofline; small batches use one block.
        batch_block = bsz if bsz <= 512 else 512
    n_blocks = pl.cdiv(bsz, batch_block)

    # Fuse the decay loss only when the whole batch is a single grid step
    # (no revisited-output hazard across a "parallel" batch axis).
    fuse_decay = bool(fuse_decay) and (n_blocks == 1) and (decays is not None)

    in_specs = [pl.BlockSpec((batch_block, fin), lambda i: (i, 0))]
    inputs = [x_slab]
    for w, b in zip(packed_weights, packed_biases):
        din, dout = w.shape
        # Constant index_map: weights/biases stay resident across batch tiles.
        in_specs.append(pl.BlockSpec((din, dout), lambda i: (0, 0)))
        in_specs.append(pl.BlockSpec((1, dout), lambda i: (0, 0)))
        inputs.extend([w, b])

    y_spec = pl.BlockSpec((batch_block, e_fout), lambda i: (i, 0))
    y_shape = jax.ShapeDtypeStruct((bsz, e_fout), out_dtype)
    if fuse_decay:
        out_specs = (y_spec, pl.BlockSpec((1, 1), lambda i: (0, 0)))
        out_shape = (y_shape, jax.ShapeDtypeStruct((1, 1), jnp.float32))
    else:
        out_specs = y_spec
        out_shape = y_shape

    # Advisory cost estimate (true MXU flops of the packed matmuls).
    flops = int(2 * bsz * sum(w.shape[0] * w.shape[1] for w in packed_weights))
    transcendentals = int(bsz * sum(w.shape[1] for w in packed_weights[:-1]))
    bytes_accessed = int(
        x_slab.size * x_slab.dtype.itemsize
        + sum(w.size * w.dtype.itemsize for w in packed_weights)
        + sum(b.size * b.dtype.itemsize for b in packed_biases)
        + bsz * e_fout * jnp.dtype(out_dtype).itemsize)

    # Per-block VMEM budget: double-buffered activation tiles + params,
    # clamped to v7x's 64 MiB physical VMEM.
    act_bytes = batch_block * (fin * x_slab.dtype.itemsize
                               + e_fout * jnp.dtype(out_dtype).itemsize)
    param_bytes = (sum(w.size * w.dtype.itemsize for w in packed_weights)
                   + sum(b.size * b.dtype.itemsize for b in packed_biases))
    vmem_limit = int(min(max(2 * (act_bytes + param_bytes) + (8 << 20), 16 << 20),
                         64 << 20))

    kernel = functools.partial(
        _fused_mlp_kernel,
        n_layers=n_layers,
        fuse_decay=fuse_decay,
        decays=tuple(float(d) for d in (decays if decays is not None else ())),
        decay_exponent=float(decay_exponent))

    result = pl.pallas_call(
        kernel,
        out_shape=out_shape,
        grid_spec=pltpu.PrefetchScalarGridSpec(
            num_scalar_prefetch=0,
            grid=(n_blocks,),
            in_specs=in_specs,
            out_specs=out_specs),
        compiler_params=pltpu.CompilerParams(
            dimension_semantics=("arbitrary",) if fuse_decay else ("parallel",),
            vmem_limit_bytes=vmem_limit),
        cost_estimate=pl.CostEstimate(
            flops=flops,
            transcendentals=transcendentals,
            bytes_accessed=bytes_accessed),
    )(*inputs)

    if fuse_decay:
        y_slab, decay = result
        return y_slab, decay
    return result, None


# ---------------------------------------------------------------------------
# Kernel 2: standalone weight-decay loss, tiled over ensemble members
#           loss = sum_l decay_l * sum(|W_l|^exponent) / 2
# ---------------------------------------------------------------------------
def _decay_loss_kernel(*refs, decays, exponent):
    o_ref = refs[-1]
    w_refs = refs[:-1]

    @pl.when(pl.program_id(0) == 0)
    def _():
        o_ref[...] = jnp.zeros_like(o_ref)

    total = jnp.zeros((1, 1), jnp.float32)
    for w_ref, d in zip(w_refs, decays):
        w = w_ref[...].astype(jnp.float32)
        total = total + (0.5 * d) * _pow_sum(w, exponent)
    o_ref[...] = o_ref[...] + total


def ensemble_decay_loss(weights, weight_decays, exponent=2.0):
    """Decay loss over the original (E, din, dout) weights, one member/step."""
    e = weights[0].shape[0]
    kernel = functools.partial(
        _decay_loss_kernel,
        decays=tuple(float(d) for d in weight_decays),
        exponent=float(exponent))
    out = pl.pallas_call(
        kernel,
        out_shape=jax.ShapeDtypeStruct((1, 1), jnp.float32),
        grid_spec=pltpu.PrefetchScalarGridSpec(
            num_scalar_prefetch=0,
            grid=(e,),                               # bounds VMEM on v7x
            in_specs=[pl.BlockSpec((1,) + w.shape[1:], lambda i: (i, 0, 0))
                      for w in weights],
            out_specs=pl.BlockSpec((1, 1), lambda i: (0, 0))),
        compiler_params=pltpu.CompilerParams(
            dimension_semantics=("arbitrary",)),     # accumulator across members
    )(*weights)
    return out[0, 0]


# ---------------------------------------------------------------------------
# Ensemble network (parameter container + forward / get_decay_loss)
# ---------------------------------------------------------------------------
class EnsembleNetworkPallas:
    """Ensemble of independent MLPs (swish hidden activations) on TPU.

    Weights are packed once at construction into a lane-dense layout so each
    layer is a single wide MXU matmul and the output is a lane-dense
    (B, E*Fout) slab.  Weights are treated as frozen after construction
    (the decay-loss cache relies on this).
    """

    def __init__(self, ensemble_size, in_features, hidden_features,
                 out_features, key, weight_decays=None,
                 param_dtype=jnp.float32):
        assert ensemble_size > 0
        self.ensemble_size = ensemble_size
        self.in_features = in_features
        self.out_features = out_features
        dims = [in_features] + list(hidden_features) + [out_features]
        n_layers = len(dims) - 1
        if weight_decays is None:
            weight_decays = [1e-4] * n_layers
        assert len(weight_decays) == n_layers
        self.weight_decays = [float(d) for d in weight_decays]

        self.weights = []      # original (E, din, dout) — used by decay kernel
        self.biases = []
        for li in range(n_layers):
            key, wk = jax.random.split(key)
            fan_in = dims[li]
            w = (jax.random.normal(
                    wk, (ensemble_size, dims[li], dims[li + 1]),
                    dtype=jnp.float32)
                 * (1.0 / jnp.sqrt(jnp.float32(fan_in)))).astype(param_dtype)
            b = jnp.zeros((ensemble_size, 1, dims[li + 1]), dtype=param_dtype)
            self.weights.append(w)
            self.biases.append(b)

        # One-time lane-dense packing (layout plumbing outside the kernel).
        self._packed_b = [_pack_bias(b) for b in self.biases]
        tail = [_block_diagonal(w) for w in self.weights[1:]]
        self._packed_w_shared = [_concat_columns(self.weights[0])] + tail
        self._packed_w_member = [_block_diagonal(self.weights[0])] + tail

        self._decay_cache = {}

    def forward(self, x):
        """x: (B, Fin) shared across members, or (E, B, Fin) per-member."""
        e = self.ensemble_size
        if x.ndim == 2:
            x_slab = x
            packed_w = self._packed_w_shared
        else:
            assert x.shape[0] == e
            _, bsz, fin = x.shape
            # Fold the member axis into the lane dimension; pairs with the
            # block-diagonal layer-0 weights.
            x_slab = jnp.transpose(x, (1, 0, 2)).reshape(bsz, e * fin)
            packed_w = self._packed_w_member

        y_slab, fused_decay = ensemble_mlp_forward(
            x_slab, packed_w, self._packed_b,
            fuse_decay=True, decays=self.weight_decays, decay_exponent=2.0)
        if fused_decay is not None:
            # decay(exponent=2) came for free while the weights were in VMEM.
            self._decay_cache[2.0] = fused_decay[0, 0]

        bsz = y_slab.shape[0]
        return y_slab.reshape(bsz, e, self.out_features).transpose(1, 0, 2)

    def get_decay_loss(self, exponent: float = 2.0):
        exponent = float(exponent)
        if exponent in self._decay_cache:
            return self._decay_cache[exponent]
        loss = ensemble_decay_loss(self.weights, self.weight_decays, exponent)
        self._decay_cache[exponent] = loss
        return loss


# ---------------------------------------------------------------------------
# Pure-JAX references for sanity checking
# ---------------------------------------------------------------------------
def _forward_ref(net, x):
    if x.ndim == 2:
        x = jnp.broadcast_to(x[None], (net.ensemble_size,) + x.shape)
    x = x.astype(jnp.float32)
    n_layers = len(net.weights)
    for li, (w, b) in enumerate(zip(net.weights, net.biases)):
        x = jnp.einsum('ebi,eio->ebo', x, w.astype(jnp.float32)) \
            + b.astype(jnp.float32)
        if li < n_layers - 1:
            x = x * jax.nn.sigmoid(x)
    return x


def _decay_ref(net, exponent=2.0):
    loss = 0.0
    for w, decay in zip(net.weights, net.weight_decays):
        loss = loss + decay * jnp.sum(jnp.abs(w.astype(jnp.float32)) ** exponent) * 0.5
    return loss


if __name__ == "__main__":
    key = jax.random.PRNGKey(0)
    key, xk, xk2 = jax.random.split(key, 3)

    ensemble_size = 4
    batch = 8
    in_features = 24
    hidden = (32, 32)
    out_features = 16

    net = EnsembleNetworkPallas(ensemble_size, in_features, hidden,
                                out_features, key)

    # shared input (B, Fin)
    x = jax.random.normal(xk, (batch, in_features), dtype=jnp.float32)
    y = jax.block_until_ready(net.forward(x))
    assert y.shape == (ensemble_size, batch, out_features)
    assert jnp.allclose(y, _forward_ref(net, x), atol=1e-4, rtol=1e-4), \
        "forward (shared x) mismatch"

    # per-member input (E, B, Fin)
    xm = jax.random.normal(xk2, (ensemble_size, batch, in_features),
                           dtype=jnp.float32)
    ym = jax.block_until_ready(net.forward(xm))
    assert ym.shape == (ensemble_size, batch, out_features)
    assert jnp.allclose(ym, _forward_ref(net, xm), atol=1e-4, rtol=1e-4), \
        "forward (per-member x) mismatch"

    # decay loss: fused-into-forward (cached) and standalone tiled kernel
    d_ref = _decay_ref(net, 2.0)
    d_fused = jax.block_until_ready(net.get_decay_loss(exponent=2.0))
    d_kernel = jax.block_until_ready(
        ensemble_decay_loss(net.weights, net.weight_decays, 2.0))
    assert jnp.allclose(d_fused, d_ref, atol=1e-5, rtol=1e-4), \
        "fused decay loss mismatch"
    assert jnp.allclose(d_kernel, d_ref, atol=1e-5, rtol=1e-4), \
        "standalone decay loss mismatch"

    print("KERNEL_OK")
</pallas_src>

<mosaic_0001>
module attributes {stable_mosaic.version = 11 : i64} {
  func.func @_fused_mlp_kernel(%arg0: i32, %arg1: memref<8x24xf32, #tpu.memory_space<vmem>>, %arg2: memref<24x128xf32, #tpu.memory_space<vmem>>, %arg3: memref<1x128xf32, #tpu.memory_space<vmem>>, %arg4: memref<128x128xf32, #tpu.memory_space<vmem>>, %arg5: memref<1x128xf32, #tpu.memory_space<vmem>>, %arg6: memref<128x64xf32, #tpu.memory_space<vmem>>, %arg7: memref<1x64xf32, #tpu.memory_space<vmem>>, %arg8: memref<8x64xf32, #tpu.memory_space<vmem>>, %arg9: memref<1x1xf32, #tpu.memory_space<vmem>>) attributes {dimension_semantics = [#tpu.dimension_semantics<arbitrary>], iteration_bounds = array<i64: 1>, scalar_prefetch = 0 : i64, scratch_operands = 0 : i64, tpu.core_type = #tpu.core_type<tc>, window_params = [{transform_indices = @transform_0, window_bounds = array<i64: 8, 24>}, {pipeline_mode = #tpu.pipeline_mode<synchronous>, transform_indices = @transform_1, window_bounds = array<i64: 24, 128>}, {pipeline_mode = #tpu.pipeline_mode<synchronous>, transform_indices = @transform_2, window_bounds = array<i64: 1, 128>}, {pipeline_mode = #tpu.pipeline_mode<synchronous>, transform_indices = @transform_3, window_bounds = array<i64: 128, 128>}, {pipeline_mode = #tpu.pipeline_mode<synchronous>, transform_indices = @transform_4, window_bounds = array<i64: 1, 128>}, {pipeline_mode = #tpu.pipeline_mode<synchronous>, transform_indices = @transform_5, window_bounds = array<i64: 128, 64>}, {pipeline_mode = #tpu.pipeline_mode<synchronous>, transform_indices = @transform_6, window_bounds = array<i64: 1, 64>}, {transform_indices = @transform_7, window_bounds = array<i64: 8, 64>}, {pipeline_mode = #tpu.pipeline_mode<synchronous>, transform_indices = @transform_8, window_bounds = array<i64: 1, 1>}]} {
    %c0 = arith.constant 0 : index
    %c0_0 = arith.constant 0 : index
    %0 = vector.load %arg1[%c0, %c0_0] : memref<8x24xf32, #tpu.memory_space<vmem>>, vector<8x24xf32>
    %c0_1 = arith.constant 0 : index
    %c0_2 = arith.constant 0 : index
    %1 = vector.load %arg2[%c0_1, %c0_2] : memref<24x128xf32, #tpu.memory_space<vmem>>, vector<24x128xf32>
    %c0_3 = arith.constant 0 : index
    %c0_4 = arith.constant 0 : index
    %2 = vector.load %arg3[%c0_3, %c0_4] : memref<1x128xf32, #tpu.memory_space<vmem>>, vector<1x128xf32>
    %cst = arith.constant dense<0.000000e+00> : vector<8x128xf32>
    %3 = tpu.matmul %0, %1, %cst {dimension_numbers = #tpu.dot_dimension_numbers<[1], [0], [0], [1], [0, 0, 1, 1], [], []>} : vector<8x24xf32>, vector<24x128xf32>, vector<8x128xf32> -> vector<8x128xf32>
    %4 = vector.broadcast %2 : vector<1x128xf32> to vector<8x128xf32>
    %5 = arith.addf %3, %4 : vector<8x128xf32>
    %6 = arith.negf %5 : vector<8x128xf32>
    %7 = math.exp %6 : vector<8x128xf32>
    %cst_5 = arith.constant 1.000000e+00 : f32
    %8 = vector.broadcast %cst_5 : f32 to vector<8x128xf32>
    %9 = arith.addf %8, %7 : vector<8x128xf32>
    %10 = arith.divf %8, %9 : vector<8x128xf32>
    %11 = arith.mulf %5, %10 : vector<8x128xf32>
    %c0_6 = arith.constant 0 : index
    %c0_7 = arith.constant 0 : index
    %12 = vector.load %arg4[%c0_6, %c0_7] : memref<128x128xf32, #tpu.memory_space<vmem>>, vector<128x128xf32>
    %c0_8 = arith.constant 0 : index
    %c0_9 = arith.constant 0 : index
    %13 = vector.load %arg5[%c0_8, %c0_9] : memref<1x128xf32, #tpu.memory_space<vmem>>, vector<1x128xf32>
    %cst_10 = arith.constant dense<0.000000e+00> : vector<8x128xf32>
    %14 = tpu.matmul %11, %12, %cst_10 {dimension_numbers = #tpu.dot_dimension_numbers<[1], [0], [0], [1], [0, 0, 1, 1], [], []>} : vector<8x128xf32>, vector<128x128xf32>, vector<8x128xf32> -> vector<8x128xf32>
    %15 = vector.broadcast %13 : vector<1x128xf32> to vector<8x128xf32>
    %16 = arith.addf %14, %15 : vector<8x128xf32>
    %17 = arith.negf %16 : vector<8x128xf32>
    %18 = math.exp %17 : vector<8x128xf32>
    %cst_11 = arith.constant 1.000000e+00 : f32
    %19 = vector.broadcast %cst_11 : f32 to vector<8x128xf32>
    %20 = arith.addf %19, %18 : vector<8x128xf32>
    %21 = arith.divf %19, %20 : vector<8x128xf32>
    %22 = arith.mulf %16, %21 : vector<8x128xf32>
    %c0_12 = arith.constant 0 : index
    %c0_13 = arith.constant 0 : index
    %23 = vector.load %arg6[%c0_12, %c0_13] : memref<128x64xf32, #tpu.memory_space<vmem>>, vector<128x64xf32>
    %c0_14 = arith.constant 0 : index
    %c0_15 = arith.constant 0 : index
    %24 = vector.load %arg7[%c0_14, %c0_15] : memref<1x64xf32, #tpu.memory_space<vmem>>, vector<1x64xf32>
    %cst_16 = arith.constant dense<0.000000e+00> : vector<8x64xf32>
    %25 = tpu.matmul %22, %23, %cst_16 {dimension_numbers = #tpu.dot_dimension_numbers<[1], [0], [0], [1], [0, 0, 1, 1], [], []>} : vector<8x128xf32>, vector<128x64xf32>, vector<8x64xf32> -> vector<8x64xf32>
    %26 = vector.broadcast %24 : vector<1x64xf32> to vector<8x64xf32>
    %27 = arith.addf %25, %26 : vector<8x64xf32>
    %c0_17 = arith.constant 0 : index
    %c0_18 = arith.constant 0 : index
    %28 = vector.load %arg8[%c0_17, %c0_18] : memref<8x64xf32, #tpu.memory_space<vmem>>, vector<8x64xf32>
    tpu.vector_store %arg8[%c0_17, %c0_18], %27 {strides = array<i32>} : memref<8x64xf32, #tpu.memory_space<vmem>>, vector<8x64xf32>,
    %cst_19 = arith.constant 0.000000e+00 : f32
    %29 = vector.broadcast %cst_19 : f32 to vector<1x1xf32>
    %c0_20 = arith.constant 0 : index
    %c0_21 = arith.constant 0 : index
    %30 = vector.load %arg2[%c0_20, %c0_21] : memref<24x128xf32, #tpu.memory_space<vmem>>, vector<24x128xf32>
    %31 = arith.mulf %30, %30 : vector<24x128xf32>
    %32 = vector.shape_cast %31 : vector<24x128xf32> to vector<1x24x128xf32>
    %cst_22 = arith.constant dense<0.000000e+00> : vector<1xf32>
    %33 = vector.multi_reduction <add>, %32, %cst_22 [1, 2] : vector<1x24x128xf32> to vector<1xf32>
    %34 = vector.shape_cast %33 : vector<1xf32> to vector<1x1x1xf32>
    %35 = vector.extract %34[0, 0, 0] : f32 from vector<1x1x1xf32>
    %cst_23 = arith.constant 5.000000e-05 : f32
    %36 = arith.mulf %cst_23, %35 : f32
    %37 = vector.broadcast %36 : f32 to vector<1x1xf32>
    %38 = arith.addf %29, %37 : vector<1x1xf32>
    %c0_24 = arith.constant 0 : index
    %c0_25 = arith.constant 0 : index
    %39 = vector.load %arg4[%c0_24, %c0_25] : memref<128x128xf32, #tpu.memory_space<vmem>>, vector<128x128xf32>
    %40 = arith.mulf %39, %39 : vector<128x128xf32>
    %41 = vector.shape_cast %40 : vector<128x128xf32> to vector<1x128x128xf32>
    %cst_26 = arith.constant dense<0.000000e+00> : vector<1xf32>
    %42 = vector.multi_reduction <add>, %41, %cst_26 [1, 2] : vector<1x128x128xf32> to vector<1xf32>
    %43 = vector.shape_cast %42 : vector<1xf32> to vector<1x1x1xf32>
    %44 = vector.extract %43[0, 0, 0] : f32 from vector<1x1x1xf32>
    %cst_27 = arith.constant 5.000000e-05 : f32
    %45 = arith.mulf %cst_27, %44 : f32
    %46 = vector.broadcast %45 : f32 to vector<1x1xf32>
    %47 = arith.addf %38, %46 : vector<1x1xf32>
    %c0_28 = arith.constant 0 : index
    %c0_29 = arith.constant 0 : index
    %48 = vector.load %arg6[%c0_28, %c0_29] : memref<128x64xf32, #tpu.memory_space<vmem>>, vector<128x64xf32>
    %49 = arith.mulf %48, %48 : vector<128x64xf32>
    %50 = vector.shape_cast %49 : vector<128x64xf32> to vector<1x128x64xf32>
    %cst_30 = arith.constant dense<0.000000e+00> : vector<1xf32>
    %51 = vector.multi_reduction <add>, %50, %cst_30 [1, 2] : vector<1x128x64xf32> to vector<1xf32>
    %52 = vector.shape_cast %51 : vector<1xf32> to vector<1x1x1xf32>
    %53 = vector.extract %52[0, 0, 0] : f32 from vector<1x1x1xf32>
    %cst_31 = arith.constant 5.000000e-05 : f32
    %54 = arith.mulf %cst_31, %53 : f32
    %55 = vector.broadcast %54 : f32 to vector<1x1xf32>
    %56 = arith.addf %47, %55 : vector<1x1xf32>
    %c0_32 = arith.constant 0 : index
    %c0_33 = arith.constant 0 : index
    %57 = vector.load %arg9[%c0_32, %c0_33] : memref<1x1xf32, #tpu.memory_space<vmem>>, vector<1x1xf32>
    tpu.vector_store %arg9[%c0_32, %c0_33], %56 {strides = array<i32>} : memref<1x1xf32, #tpu.memory_space<vmem>>, vector<1x1xf32>,
    return
  }
  func.func @transform_0(%arg0: i32) -> (i32, i32) {
    %c0_i32 = arith.constant 0 : i32
    %c0_i32_0 = arith.constant 0 : i32
    return %arg0, %c0_i32 : i32, i32
  }
  func.func @transform_1(%arg0: i32) -> (i32, i32) {
    %c0_i32 = arith.constant 0 : i32
    %c0_i32_0 = arith.constant 0 : i32
    %c0_i32_1 = arith.constant 0 : i32
    return %c0_i32, %c0_i32_0 : i32, i32
  }
  func.func @transform_2(%arg0: i32) -> (i32, i32) {
    %c0_i32 = arith.constant 0 : i32
    %c0_i32_0 = arith.constant 0 : i32
    %c0_i32_1 = arith.constant 0 : i32
    return %c0_i32, %c0_i32_0 : i32, i32
  }
  func.func @transform_3(%arg0: i32) -> (i32, i32) {
    %c0_i32 = arith.constant 0 : i32
    %c0_i32_0 = arith.constant 0 : i32
    %c0_i32_1 = arith.constant 0 : i32
    return %c0_i32, %c0_i32_0 : i32, i32
  }
  func.func @transform_4(%arg0: i32) -> (i32, i32) {
    %c0_i32 = arith.constant 0 : i32
    %c0_i32_0 = arith.constant 0 : i32
    %c0_i32_1 = arith.constant 0 : i32
    return %c0_i32, %c0_i32_0 : i32, i32
  }
  func.func @transform_5(%arg0: i32) -> (i32, i32) {
    %c0_i32 = arith.constant 0 : i32
    %c0_i32_0 = arith.constant 0 : i32
    %c0_i32_1 = arith.constant 0 : i32
    return %c0_i32, %c0_i32_0 : i32, i32
  }
  func.func @transform_6(%arg0: i32) -> (i32, i32) {
    %c0_i32 = arith.constant 0 : i32
    %c0_i32_0 = arith.constant 0 : i32
    %c0_i32_1 = arith.constant 0 : i32
    return %c0_i32, %c0_i32_0 : i32, i32
  }
  func.func @transform_7(%arg0: i32) -> (i32, i32) {
    %c0_i32 = arith.constant 0 : i32
    %c0_i32_0 = arith.constant 0 : i32
    return %arg0, %c0_i32 : i32, i32
  }
  func.func @transform_8(%arg0: i32) -> (i32, i32) {
    %c0_i32 = arith.constant 0 : i32
    %c0_i32_0 = arith.constant 0 : i32
    %c0_i32_1 = arith.constant 0 : i32
    return %c0_i32, %c0_i32_0 : i32, i32
  }
}

</mosaic_0001>

<llo_original>
// kernel: tpu_custom_call.1
$region0: #{tpu_custom_call.1}
  #allocation0 [shape = 'u32[]', space=smem, size = 0x4, offset = 0x4, fixed_abs, tag = 'smem constant byte address 0x4 - core index']
  #allocation1 [shape = 'u32[144,128]{1,0:T(1,128)}', space=vmem, size = 0x12000, scoped, tag = 'internal scratch']
  %s0 = inlined_call_operand.vmem [shape: f32[8,24], index: 0, kind: input, shape index: {}]
  %s1 = inlined_call_operand.vmem [shape: f32[24,128], index: 1, kind: input, shape index: {}]
  %s2 = inlined_call_operand.vmem [shape: f32[1,128], index: 2, kind: input, shape index: {}]
  %s3 = inlined_call_operand.vmem [shape: f32[128,128], index: 3, kind: input, shape index: {}]
  %s4 = inlined_call_operand.vmem [shape: f32[1,128], index: 4, kind: input, shape index: {}]
  %s5 = inlined_call_operand.vmem [shape: f32[128,64], index: 5, kind: input, shape index: {}]
  %s6 = inlined_call_operand.vmem [shape: f32[1,64], index: 6, kind: input, shape index: {}]
  %s7 = inlined_call_operand.hbm [shape: f32[8,64], index: 7, kind: output, shape index: {0}]
  %s8 = inlined_call_operand.hbm [shape: f32[1,1], index: 8, kind: output, shape index: {1}]
  %9 = xla_tuple %s7, %s8
  %s10 = sld [smem:[#allocation0]]
  $region46: #{tpu_custom_call.1} parent=0
    _
  %s12 = ssub.s32 1, %s10
  %s13 = scalar_select 0, %s12, %s10
  $region1: #{tpu_custom_call.1} parent=0
    #allocation2 [shape = 'u8[4096]{0}', space=vmem, size = 0x1000, scoped, tag = 'output window, operand 0, single buffered']
    #allocation3 [shape = 's32[1]{0}', space=sflag, size = 0x4, scoped, tag = 'scoped memory for tpu_custom_call.1']
    #allocation4 [shape = 'u8[512]{0}', space=vmem, size = 0x400, scoped, tag = 'output window, operand 1, single buffered']
    #allocation5 [shape = 's32[1]{0}', space=sflag, size = 0x4, scoped, tag = 'scoped memory for tpu_custom_call.1']
    %14 = vsyncpa [#allocation3], 0
    %15 = vsyncpa [#allocation5], 0
    // Predicated region
    $region2: #{tpu_custom_call.1} parent=1 // pred_check
      _
    $region3: #{tpu_custom_call.1} parent=1 // pred_check_branch
      %17 = sbr.rel (0) target = $region5
    $region4: #{tpu_custom_call.1} parent=1 // pred_region
      _
    $region5: #{tpu_custom_call.1} parent=1 // pred_fallthru
      _
    // Predicated region
    $region6: #{tpu_custom_call.1} parent=1 // pred_check
      _
    $region7: #{tpu_custom_call.1} parent=1 // pred_check_branch
      %19 = sbr.rel (0) target = $region9
    $region8: #{tpu_custom_call.1} parent=1 // pred_region
      _
    $region9: #{tpu_custom_call.1} parent=1 // pred_fallthru
      _
    // Predicated region
    $region10: #{tpu_custom_call.1} parent=1 // pred_check
      _
    $region11: #{tpu_custom_call.1} parent=1 // pred_check_branch
      %21 = sbr.rel (0) target = $region13
    $region12: #{tpu_custom_call.1} parent=1 // pred_region
      _
    $region13: #{tpu_custom_call.1} parent=1 // pred_fallthru
      _
    // Predicated region
    $region14: #{tpu_custom_call.1} parent=1 // pred_check
      _
    $region15: #{tpu_custom_call.1} parent=1 // pred_check_branch
      %23 = sbr.rel (0) target = $region17
    $region16: #{tpu_custom_call.1} parent=1 // pred_region
      _
    $region17: #{tpu_custom_call.1} parent=1 // pred_fallthru
      _
    // Predicated region
    $region18: #{tpu_custom_call.1} parent=1 // pred_check
      _
    $region19: #{tpu_custom_call.1} parent=1 // pred_check_branch
      %25 = sbr.rel (0) target = $region21
    $region20: #{tpu_custom_call.1} parent=1 // pred_region
      _
    $region21: #{tpu_custom_call.1} parent=1 // pred_fallthru
      _
    // Predicated region
    $region22: #{tpu_custom_call.1} parent=1 // pred_check
      _
    $region23: #{tpu_custom_call.1} parent=1 // pred_check_branch
      %27 = sbr.rel (0) target = $region25
    $region24: #{tpu_custom_call.1} parent=1 // pred_region
      _
    $region25: #{tpu_custom_call.1} parent=1 // pred_fallthru
      _
    // Predicated region
    $region26: #{tpu_custom_call.1} parent=1 // pred_check
      _
    $region27: #{tpu_custom_call.1} parent=1 // pred_check_branch
      %29 = sbr.rel (0) target = $region29
    $region28: #{tpu_custom_call.1} parent=1 // pred_region
      _
    $region29: #{tpu_custom_call.1} parent=1 // pred_fallthru
      _
    %v30 = vld [vmem:[%s0] sm:$0xff]
    %v31 = vld [vmem:[%s1] sm:$0xff]
    %v32 = vld [vmem:[%s1 + $0x8] sm:$0xff]
    %v33 = vld [vmem:[%s1 + $0x10] sm:$0xff]
    %v34 = vld [vmem:[%s2] sm:$0x1]
    %v36 = vlaneseq
    %v37 = vshrl.u32 %v36, 7
    %v38 = vsub.s32 0, %v37
    %v39 = vrot.slane %v34, %v38
    %vm41 = vcmask 195584
    %v43 = vsel %vm41, %v30, 0
    %45 = vmatprep.subr.mxu0 0.0
    %46 = vmatpush1.msra.mxu0 %v31
    %47 = vmatprep.subr.mxu0 0.0
    %48 = vmatpush1.msra.mxu0 %v32
    %49 = vmatprep.subr.mxu0 0.0
    %50 = vmatpush1.msra.mxu0 %v33
    %51 = vmatprep.subr.mxu0 0.0
    %52 = vmatpush1.msra.mxu0 0.0
    %53 = vmatprep.subr.mxu0 0.0
    %54 = vmatpush1.msra.mxu0 0.0
    %55 = vmatprep.subr.mxu0 0.0
    %56 = vmatpush1.msra.mxu0 0.0
    %57 = vmatprep.subr.mxu0 0.0
    %58 = vmatpush1.msra.mxu0 0.0
    %59 = vmatprep.subr.mxu0 0.0
    %60 = vmatpush1.msra.mxu0 0.0
    %61 = vmatprep.subr.mxu0 0.0
    %62 = vmatpush1.msra.mxu0 0.0
    %63 = vmatprep.subr.mxu0 0.0
    %64 = vmatpush1.msra.mxu0 0.0
    %65 = vmatprep.subr.mxu0 0.0
    %66 = vmatpush1.msra.mxu0 0.0
    %67 = vmatprep.subr.mxu0 0.0
    %68 = vmatpush1.msra.mxu0 0.0
    %69 = vmatprep.subr.mxu0 0.0
    %70 = vmatpush1.msra.mxu0 0.0
    %71 = vmatprep.subr.mxu0 0.0
    %72 = vmatpush1.msra.mxu0 0.0
    %73 = vmatprep.subr.mxu0 0.0
    %74 = vmatpush1.msra.mxu0 0.0
    %75 = vmatprep.subr.mxu0 0.0
    %76 = vmatpush1.msra.mxu0 0.0
    %77 = vmatprep.subr.mxu0 0.0
    %78 = vmatpush1.msra.mxu0 0.0
    %79 = vmatprep.subr.mxu0 0.0
    %80 = vmatpush1.msra.mxu0 0.0
    %81 = vmatprep.subr.mxu0 0.0
    %82 = vmatpush1.msra.mxu0 0.0
    %83 = vmatprep.subr.mxu0 0.0
    %84 = vmatpush1.msra.mxu0 0.0
    %85 = vmatprep.subr.mxu0 0.0
    %86 = vmatpush1.msra.mxu0 0.0
    %87 = vmatprep.subr.mxu0 0.0
    %88 = vmatpush1.msra.mxu0 0.0
    %89 = vmatprep.subr.mxu0 0.0
    %90 = vmatpush1.msra.mxu0 0.0
    %91 = vmatprep.subr.mxu0 0.0
    %92 = vmatpush1.msra.mxu0 0.0
    %93 = vmatprep.subr.mxu0 0.0
    %94 = vmatpush1.msra.mxu0 0.0
    %95 = vmatprep.subr.mxu0 0.0
    %96 = vmatpush1.msra.mxu0 0.0
    %97 = vmatprep.subr.mxu0 0.0
    %98 = vmatpush1.msra.mxu0 0.0
    %99 = vmatprep.subr.mxu0 0.0
    %100 = vmatpush1.msra.mxu0 0.0
    %101 = vmatprep.subr.mxu0 0.0
    %102 = vmatpush1.msra.mxu0 0.0
    %103 = vmatprep.subr.mxu0 0.0
    %104 = vmatpush1.msra.mxu0 0.0
    %105 = vmatprep.subr.mxu0 0.0
    %106 = vmatpush1.msra.mxu0 0.0
    %107 = vmatprep.subr.mxu0 0.0
    %108 = vmatpush1.msra.mxu0 0.0
    %109 = vmatprep.mubr.f32.mxu0 0.0
    %110 = vmatmul.mubr.f32.gmra.mrb[0].mxu0 %v43
    %v111 = vpop.f32.mrb[0].mxu0
    %v112 = vadd.f32 %v39, %v111
    %v113 = vpop.f32.mrb[0].mxu0
    %114 = vdwg.mxu0
    %v115 = vxor.u32 %v112, 2147483648
    %v116 = vmul.f32 %v115, 1.442695
    %v117 = vpow.pop %v116
    %v118 = vadd.f32 %v117, 1.0
    %v119 = vrcp.pop %v118
    %v120 = vmul.f32 1.0, %v119
    %v121 = vmul.f32 %v112, %v120
    %v122 = vld [vmem:[%s3] sm:$0xff]
    %v123 = vld [vmem:[%s3 + $0x8] sm:$0xff]
    %v124 = vld [vmem:[%s3 + $0x10] sm:$0xff]
    %v125 = vld [vmem:[%s3 + $0x18] sm:$0xff]
    %v126 = vld [vmem:[%s3 + $0x20] sm:$0xff]
    %v127 = vld [vmem:[%s3 + $0x28] sm:$0xff]
    %v128 = vld [vmem:[%s3 + $0x30] sm:$0xff]
    %v129 = vld [vmem:[%s3 + $0x38] sm:$0xff]
    %v130 = vld [vmem:[%s3 + $0x40] sm:$0xff]
    %v131 = vld [vmem:[%s3 + $0x48] sm:$0xff]
    %v132 = vld [vmem:[%s3 + $0x50] sm:$0xff]
    %v133 = vld [vmem:[%s3 + $0x58] sm:$0xff]
    %v134 = vld [vmem:[%s3 + $0x60] sm:$0xff]
    %v135 = vld [vmem:[%s3 + $0x68] sm:$0xff]
    %v136 = vld [vmem:[%s3 + $0x70] sm:$0xff]
    %v137 = vld [vmem:[%s3 + $0x78] sm:$0xff]
    %v138 = vld [vmem:[%s4] sm:$0x1]
    %v140 = vlaneseq
    %v141 = vshrl.u32 %v140, 7
    %v142 = vsub.s32 0, %v141
    %v143 = vrot.slane %v138, %v142
    %145 = vmatprep.subr.mxu0 0.0
    %146 = vmatpush1.msra.mxu0 %v122
    %147 = vmatprep.subr.mxu0 0.0
    %148 = vmatpush1.msra.mxu0 %v123
    %149 = vmatprep.subr.mxu0 0.0
    %150 = vmatpush1.msra.mxu0 %v124
    %151 = vmatprep.subr.mxu0 0.0
    %152 = vmatpush1.msra.mxu0 %v125
    %153 = vmatprep.subr.mxu0 0.0
    %154 = vmatpush1.msra.mxu0 %v126
    %155 = vmatprep.subr.mxu0 0.0
    %156 = vmatpush1.msra.mxu0 %v127
    %157 = vmatprep.subr.mxu0 0.0
    %158 = vmatpush1.msra.mxu0 %v128
    %159 = vmatprep.subr.mxu0 0.0
    %160 = vmatpush1.msra.mxu0 %v129
    %161 = vmatprep.subr.mxu0 0.0
    %162 = vmatpush1.msra.mxu0 %v130
    %163 = vmatprep.subr.mxu0 0.0
    %164 = vmatpush1.msra.mxu0 %v131
    %165 = vmatprep.subr.mxu0 0.0
    %166 = vmatpush1.msra.mxu0 %v132
    %167 = vmatprep.subr.mxu0 0.0
    %168 = vmatpush1.msra.mxu0 %v133
    %169 = vmatprep.subr.mxu0 0.0
    %170 = vmatpush1.msra.mxu0 %v134
    %171 = vmatprep.subr.mxu0 0.0
    %172 = vmatpush1.msra.mxu0 %v135
    %173 = vmatprep.subr.mxu0 0.0
    %174 = vmatpush1.msra.mxu0 %v136
    %175 = vmatprep.subr.mxu0 0.0
    %176 = vmatpush1.msra.mxu0 %v137
    %177 = vmatprep.subr.mxu0 0.0
    %178 = vmatpush1.msra.mxu0 0.0
    %179 = vmatprep.subr.mxu0 0.0
    %180 = vmatpush1.msra.mxu0 0.0
    %181 = vmatprep.subr.mxu0 0.0
    %182 = vmatpush1.msra.mxu0 0.0
    %183 = vmatprep.subr.mxu0 0.0
    %184 = vmatpush1.msra.mxu0 0.0
    %185 = vmatprep.subr.mxu0 0.0
    %186 = vmatpush1.msra.mxu0 0.0
    %187 = vmatprep.subr.mxu0 0.0
    %188 = vmatpush1.msra.mxu0 0.0
    %189 = vmatprep.subr.mxu0 0.0
    %190 = vmatpush1.msra.mxu0 0.0
    %191 = vmatprep.subr.mxu0 0.0
    %192 = vmatpush1.msra.mxu0 0.0
    %193 = vmatprep.subr.mxu0 0.0
    %194 = vmatpush1.msra.mxu0 0.0
    %195 = vmatprep.subr.mxu0 0.0
    %196 = vmatpush1.msra.mxu0 0.0
    %197 = vmatprep.subr.mxu0 0.0
    %198 = vmatpush1.msra.mxu0 0.0
    %199 = vmatprep.subr.mxu0 0.0
    %200 = vmatpush1.msra.mxu0 0.0
    %201 = vmatprep.subr.mxu0 0.0
    %202 = vmatpush1.msra.mxu0 0.0
    %203 = vmatprep.subr.mxu0 0.0
    %204 = vmatpush1.msra.mxu0 0.0
    %205 = vmatprep.subr.mxu0 0.0
    %206 = vmatpush1.msra.mxu0 0.0
    %207 = vmatprep.subr.mxu0 0.0
    %208 = vmatpush1.msra.mxu0 0.0
    %209 = vmatprep.mubr.f32.mxu0 0.0
    %210 = vmatmul.mubr.f32.gmra.mrb[0].mxu0 %v121
    %v211 = vpop.f32.mrb[0].mxu0
    %v212 = vadd.f32 %v143, %v211
    %v213 = vpop.f32.mrb[0].mxu0
    %214 = vdwg.mxu0
    %v215 = vxor.u32 %v212, 2147483648
    %v216 = vmul.f32 %v215, 1.442695
    %v217 = vpow.pop %v216
    %v218 = vadd.f32 %v217, 1.0
    %v219 = vrcp.pop %v218
    %v220 = vmul.f32 1.0, %v219
    %v221 = vmul.f32 %v212, %v220
    %v222 = vld [vmem:[%s5] sm:$0xff]
    %v223 = vld [vmem:[%s5 + $0x8] sm:$0xff]
    %v224 = vld [vmem:[%s5 + $0x10] sm:$0xff]
    %v225 = vld [vmem:[%s5 + $0x18] sm:$0xff]
    %v226 = vld [vmem:[%s5 + $0x20] sm:$0xff]
    %v227 = vld [vmem:[%s5 + $0x28] sm:$0xff]
    %v228 = vld [vmem:[%s5 + $0x30] sm:$0xff]
    %v229 = vld [vmem:[%s5 + $0x38] sm:$0xff]
    %v230 = vld [vmem:[%s5 + $0x40] sm:$0xff]
    %v231 = vld [vmem:[%s5 + $0x48] sm:$0xff]
    %v232 = vld [vmem:[%s5 + $0x50] sm:$0xff]
    %v233 = vld [vmem:[%s5 + $0x58] sm:$0xff]
    %v234 = vld [vmem:[%s5 + $0x60] sm:$0xff]
    %v235 = vld [vmem:[%s5 + $0x68] sm:$0xff]
    %v236 = vld [vmem:[%s5 + $0x70] sm:$0xff]
    %v237 = vld [vmem:[%s5 + $0x78] sm:$0xff]
    %v238 = vld [vmem:[%s6] sm:$0x1]
    %v240 = vlaneseq
    %v241 = vshrl.u32 %v240, 7
    %v242 = vsub.s32 0, %v241
    %v243 = vrot.slane %v238, %v242
    %245 = vmatprep.subr.mxu0 0.0
    %246 = vmatpush1.msra.mxu0 %v222
    %247 = vmatprep.subr.mxu0 0.0
    %248 = vmatpush1.msra.mxu0 %v223
    %249 = vmatprep.subr.mxu0 0.0
    %250 = vmatpush1.msra.mxu0 %v224
    %251 = vmatprep.subr.mxu0 0.0
    %252 = vmatpush1.msra.mxu0 %v225
    %253 = vmatprep.subr.mxu0 0.0
    %254 = vmatpush1.msra.mxu0 %v226
    %255 = vmatprep.subr.mxu0 0.0
    %256 = vmatpush1.msra.mxu0 %v227
    %257 = vmatprep.subr.mxu0 0.0
    %258 = vmatpush1.msra.mxu0 %v228
    %259 = vmatprep.subr.mxu0 0.0
    %260 = vmatpush1.msra.mxu0 %v229
    %261 = vmatprep.subr.mxu0 0.0
    %262 = vmatpush1.msra.mxu0 %v230
    %263 = vmatprep.subr.mxu0 0.0
    %264 = vmatpush1.msra.mxu0 %v231
    %265 = vmatprep.subr.mxu0 0.0
    %266 = vmatpush1.msra.mxu0 %v232
    %267 = vmatprep.subr.mxu0 0.0
    %268 = vmatpush1.msra.mxu0 %v233
    %269 = vmatprep.subr.mxu0 0.0
    %270 = vmatpush1.msra.mxu0 %v234
    %271 = vmatprep.subr.mxu0 0.0
    %272 = vmatpush1.msra.mxu0 %v235
    %273 = vmatprep.subr.mxu0 0.0
    %274 = vmatpush1.msra.mxu0 %v236
    %275 = vmatprep.subr.mxu0 0.0
    %276 = vmatpush1.msra.mxu0 %v237
    %277 = vmatprep.subr.mxu0 0.0
    %278 = vmatpush1.msra.mxu0 0.0
    %279 = vmatprep.subr.mxu0 0.0
    %280 = vmatpush1.msra.mxu0 0.0
    %281 = vmatprep.subr.mxu0 0.0
    %282 = vmatpush1.msra.mxu0 0.0
    %283 = vmatprep.subr.mxu0 0.0
    %284 = vmatpush1.msra.mxu0 0.0
    %285 = vmatprep.subr.mxu0 0.0
    %286 = vmatpush1.msra.mxu0 0.0
    %287 = vmatprep.subr.mxu0 0.0
    %288 = vmatpush1.msra.mxu0 0.0
    %289 = vmatprep.subr.mxu0 0.0
    %290 = vmatpush1.msra.mxu0 0.0
    %291 = vmatprep.subr.mxu0 0.0
    %292 = vmatpush1.msra.mxu0 0.0
    %293 = vmatprep.subr.mxu0 0.0
    %294 = vmatpush1.msra.mxu0 0.0
    %295 = vmatprep.subr.mxu0 0.0
    %296 = vmatpush1.msra.mxu0 0.0
    %297 = vmatprep.subr.mxu0 0.0
    %298 = vmatpush1.msra.mxu0 0.0
    %299 = vmatprep.subr.mxu0 0.0
    %300 = vmatpush1.msra.mxu0 0.0
    %301 = vmatprep.subr.mxu0 0.0
    %302 = vmatpush1.msra.mxu0 0.0
    %303 = vmatprep.subr.mxu0 0.0
    %304 = vmatpush1.msra.mxu0 0.0
    %305 = vmatprep.subr.mxu0 0.0
    %306 = vmatpush1.msra.mxu0 0.0
    %307 = vmatprep.subr.mxu0 0.0
    %308 = vmatpush1.msra.mxu0 0.0
    %309 = vmatprep.mubr.f32.mxu0 0.0
    %310 = vmatmul.mubr.f32.gmra.mrb[0].mxu0 %v221
    %v311 = vpop.f32.mrb[0].mxu0
    %v312 = vadd.f32 %v243, %v311
    %v313 = vpop.f32.mrb[0].mxu0
    %314 = vdwg.mxu0
    %vm315 = vcmask 523264
    %316 = vst.msk [vmem:[#allocation2] sm:$0xff] %vm315, %v312
    %v317 = vld [vmem:[%s1] sm:$0xff]
    %v318 = vld [vmem:[%s1 + $0x8] sm:$0xff]
    %v319 = vld [vmem:[%s1 + $0x10] sm:$0xff]
    %v320 = vmul.f32 %v317, %v317
    %v321 = vmul.f32 %v318, %v318
    %v322 = vmul.f32 %v319, %v319
    %v323 = vadd.f32 %v320, %v321
    %v324 = vadd.f32 %v323, %v322
    %325 = vadd.xlane.f32.xlu0 %v324
    %v326 = vpop.xlane.xlu0 %325
    %v327 = vrot.slane %v326, 4
    %v328 = vadd.f32 %v326, %v327
    %v329 = vrot.slane %v328, 2
    %v330 = vadd.f32 %v328, %v329
    %v331 = vrot.slane %v330, 1
    %v332 = vadd.f32 %v330, %v331
    %s333 = vtos %v332
    %s334 = smul.f32 %s333, 5e-05
    %v335 = vstv %s334
    %v336 = vadd.f32 %v335, 0.0
    %v337 = vld [vmem:[%s3] sm:$0xff]
    %v338 = vld [vmem:[%s3 + $0x8] sm:$0xff]
    %v339 = vld [vmem:[%s3 + $0x10] sm:$0xff]
    %v340 = vld [vmem:[%s3 + $0x18] sm:$0xff]
    %v341 = vld [vmem:[%s3 + $0x20] sm:$0xff]
    %v342 = vld [vmem:[%s3 + $0x28] sm:$0xff]
    %v343 = vld [vmem:[%s3 + $0x30] sm:$0xff]
    %v344 = vld [vmem:[%s3 + $0x38] sm:$0xff]
    %v345 = vld [vmem:[%s3 + $0x40] sm:$0xff]
    %v346 = vld [vmem:[%s3 + $0x48] sm:$0xff]
    %v347 = vld [vmem:[%s3 + $0x50] sm:$0xff]
    %v348 = vld [vmem:[%s3 + $0x58] sm:$0xff]
    %v349 = vld [vmem:[%s3 + $0x60] sm:$0xff]
    %v350 = vld [vmem:[%s3 + $0x68] sm:$0xff]
    %v351 = vld [vmem:[%s3 + $0x70] sm:$0xff]
    %v352 = vld [vmem:[%s3 + $0x78] sm:$0xff]
    %v353 = vmul.f32 %v337, %v337
    %v354 = vmul.f32 %v338, %v338
    %v355 = vmul.f32 %v339, %v339
    %v356 = vmul.f32 %v340, %v340
    %v357 = vmul.f32 %v341, %v341
    %v358 = vmul.f32 %v342, %v342
    %v359 = vmul.f32 %v343, %v343
    %v360 = vmul.f32 %v344, %v344
    %v361 = vmul.f32 %v345, %v345
    %v362 = vmul.f32 %v346, %v346
    %v363 = vmul.f32 %v347, %v347
    %v364 = vmul.f32 %v348, %v348
    %v365 = vmul.f32 %v349, %v349
    %v366 = vmul.f32 %v350, %v350
    %v367 = vmul.f32 %v351, %v351
    %v368 = vmul.f32 %v352, %v352
    %v369 = vadd.f32 %v353, %v354
    %v370 = vadd.f32 %v369, %v355
    %v371 = vadd.f32 %v370, %v356
    %v372 = vadd.f32 %v371, %v357
    %v373 = vadd.f32 %v372, %v358
    %v374 = vadd.f32 %v373, %v359
    %v375 = vadd.f32 %v374, %v360
    %v376 = vadd.f32 %v375, %v361
    %v377 = vadd.f32 %v376, %v362
    %v378 = vadd.f32 %v377, %v363
    %v379 = vadd.f32 %v378, %v364
    %v380 = vadd.f32 %v379, %v365
    %v381 = vadd.f32 %v380, %v366
    %v382 = vadd.f32 %v381, %v367
    %v383 = vadd.f32 %v382, %v368
    %384 = vadd.xlane.f32.xlu0 %v383
    %v385 = vpop.xlane.xlu0 %384
    %v386 = vrot.slane %v385, 4
    %v387 = vadd.f32 %v385, %v386
    %v388 = vrot.slane %v387, 2
    %v389 = vadd.f32 %v387, %v388
    %v390 = vrot.slane %v389, 1
    %v391 = vadd.f32 %v389, %v390
    %s392 = vtos %v391
    %s393 = smul.f32 %s392, 5e-05
    %v394 = vstv %s393
    %v395 = vadd.f32 %v336, %v394
    %v396 = vld [vmem:[%s5] sm:$0xff]
    %v397 = vld [vmem:[%s5 + $0x8] sm:$0xff]
    %v398 = vld [vmem:[%s5 + $0x10] sm:$0xff]
    %v399 = vld [vmem:[%s5 + $0x18] sm:$0xff]
    %v400 = vld [vmem:[%s5 + $0x20] sm:$0xff]
    %v401 = vld [vmem:[%s5 + $0x28] sm:$0xff]
    %v402 = vld [vmem:[%s5 + $0x30] sm:$0xff]
    %v403 = vld [vmem:[%s5 + $0x38] sm:$0xff]
    %v404 = vld [vmem:[%s5 + $0x40] sm:$0xff]
    %v405 = vld [vmem:[%s5 + $0x48] sm:$0xff]
    %v406 = vld [vmem:[%s5 + $0x50] sm:$0xff]
    %v407 = vld [vmem:[%s5 + $0x58] sm:$0xff]
    %v408 = vld [vmem:[%s5 + $0x60] sm:$0xff]
    %v409 = vld [vmem:[%s5 + $0x68] sm:$0xff]
    %v410 = vld [vmem:[%s5 + $0x70] sm:$0xff]
    %v411 = vld [vmem:[%s5 + $0x78] sm:$0xff]
    %v412 = vmul.f32 %v396, %v396
    %v413 = vmul.f32 %v397, %v397
    %v414 = vmul.f32 %v398, %v398
    %v415 = vmul.f32 %v399, %v399
    %v416 = vmul.f32 %v400, %v400
    %v417 = vmul.f32 %v401, %v401
    %v418 = vmul.f32 %v402, %v402
    %v419 = vmul.f32 %v403, %v403
    %v420 = vmul.f32 %v404, %v404
    %v421 = vmul.f32 %v405, %v405
    %v422 = vmul.f32 %v406, %v406
    %v423 = vmul.f32 %v407, %v407
    %v424 = vmul.f32 %v408, %v408
    %v425 = vmul.f32 %v409, %v409
    %v426 = vmul.f32 %v410, %v410
    %v427 = vmul.f32 %v411, %v411
    %v428 = vsel %vm315, %v412, 0.0
    %v429 = vsel %vm315, %v413, 0.0
    %v430 = vadd.f32 %v428, %v429
    %v431 = vsel %vm315, %v414, 0.0
    %v432 = vadd.f32 %v430, %v431
    %v433 = vsel %vm315, %v415, 0.0
    %v434 = vadd.f32 %v432, %v433
    %v435 = vsel %vm315, %v416, 0.0
    %v436 = vadd.f32 %v434, %v435
    %v437 = vsel %vm315, %v417, 0.0
    %v438 = vadd.f32 %v436, %v437
    %v439 = vsel %vm315, %v418, 0.0
    %v440 = vadd.f32 %v438, %v439
    %v441 = vsel %vm315, %v419, 0.0
    %v442 = vadd.f32 %v440, %v441
    %v443 = vsel %vm315, %v420, 0.0
    %v444 = vadd.f32 %v442, %v443
    %v445 = vsel %vm315, %v421, 0.0
    %v446 = vadd.f32 %v444, %v445
    %v447 = vsel %vm315, %v422, 0.0
    %v448 = vadd.f32 %v446, %v447
    %v449 = vsel %vm315, %v423, 0.0
    %v450 = vadd.f32 %v448, %v449
    %v451 = vsel %vm315, %v424, 0.0
    %v452 = vadd.f32 %v450, %v451
    %v453 = vsel %vm315, %v425, 0.0
    %v454 = vadd.f32 %v452, %v453
    %v455 = vsel %vm315, %v426, 0.0
    %v456 = vadd.f32 %v454, %v455
    %v457 = vsel %vm315, %v427, 0.0
    %v458 = vadd.f32 %v456, %v457
    %459 = vadd.xlane.f32.xlu0 %v458
    %v460 = vpop.xlane.xlu0 %459
    %v461 = vrot.slane %v460, 4
    %v462 = vadd.f32 %v460, %v461
    %v463 = vrot.slane %v462, 2
    %v464 = vadd.f32 %v462, %v463
    %v465 = vrot.slane %v464, 1
    %v466 = vadd.f32 %v464, %v465
    %s467 = vtos %v466
    %s468 = smul.f32 %s467, 5e-05
    %v469 = vstv %s468
    %v470 = vadd.f32 %v395, %v469
    %vm471 = vcmask 0
    %472 = vst.msk [vmem:[#allocation4] sm:$0x1] %vm471, %v470
    // Predicated region
    $region30: #{tpu_custom_call.1} parent=1 // pred_check
      _
    $region31: #{tpu_custom_call.1} parent=1 // pred_check_branch
      %474 = sbr.rel (0) target = $region33
    $region32: #{tpu_custom_call.1} parent=1 // pred_region
      %s476 = ssub.s32 128, 128
      %477 = vsyncadd [#allocation3], %s476
      %s479 = sshll.u32 [#allocation2], 4
      %s480 = int_to_ptr.vmem [resolvable:$true] %s479
      %482 = dma.vmem_to_hbm [thread:$0]  %s480, 128, %s7, [#allocation3]
    $region33: #{tpu_custom_call.1} parent=1 // pred_fallthru
      _
    // Predicated region
    $region34: #{tpu_custom_call.1} parent=1 // pred_check
      _
    $region35: #{tpu_custom_call.1} parent=1 // pred_check_branch
      %484 = sbr.rel (0) target = $region37
    $region36: #{tpu_custom_call.1} parent=1 // pred_region
      %s486 = ssub.s32 16, 16
      %487 = vsyncadd [#allocation5], %s486
      %s489 = sshll.u32 [#allocation4], 4
      %s490 = int_to_ptr.vmem [resolvable:$true] %s489
      %492 = dma.vmem_to_hbm [thread:$0]  %s490, 16, %s8, [#allocation5]
    $region37: #{tpu_custom_call.1} parent=1 // pred_fallthru
      _
    // Predicated region
    $region38: #{tpu_custom_call.1} parent=1 // pred_check
      _
    $region39: #{tpu_custom_call.1} parent=1 // pred_check_branch
      %494 = sbr.rel (0) target = $region41
    $region40: #{tpu_custom_call.1} parent=1 // pred_region
      %495 = dma.done [#allocation3], 128
    $region41: #{tpu_custom_call.1} parent=1 // pred_fallthru
      _
    // Predicated region
    $region42: #{tpu_custom_call.1} parent=1 // pred_check
      _
    $region43: #{tpu_custom_call.1} parent=1 // pred_check_branch
      %497 = sbr.rel (0) target = $region45
    $region44: #{tpu_custom_call.1} parent=1 // pred_region
      %498 = dma.done [#allocation5], 16
    $region45: #{tpu_custom_call.1} parent=1 // pred_fallthru
      _
    %499 = vsyncpa [#allocation3], 1
    %500 = vsyncpa [#allocation5], 1

</llo_original>
